<compile_context>
chip_gen: v7x
topology: tpu7x:2x2x1
jax: 0.10.0
libtpu: 0.0.40
codegen_flags: <defaults>
</compile_context>

<pallas_src>
import jax
import jax.numpy as jnp
from jax.experimental import pallas as pl
from jax.experimental.pallas import tpu as pltpu


_QUANT = 8 * 128  # one dense f32 vreg worth of elements


# ---------------------------------------------------------------------------
# helpers
# ---------------------------------------------------------------------------
def _pick_tile(total, target, quantum):
    """Largest tile <= max(target, quantum) that divides `total` and is a
    multiple of `quantum`.  `total` must be a multiple of `quantum`, so the
    search always terminates at `quantum` (never falls back to full extent)."""
    assert total % quantum == 0
    if total <= target:
        return total
    t = max((target // quantum) * quantum, quantum)
    while total % t != 0:
        t -= quantum
    return t


def _pad_to_multiple(x, multiple, axis, value):
    n = x.shape[axis]
    pad = (-n) % multiple
    if pad == 0:
        return x, n
    widths = [(0, 0)] * x.ndim
    widths[axis] = (0, pad)
    return jnp.pad(x, widths, constant_values=value), n


def _to_f32(x):
    return x if x.dtype == jnp.float32 else x.astype(jnp.float32)


# ---------------------------------------------------------------------------
# Pallas kernels
# ---------------------------------------------------------------------------
def _ce_sum_kernel(logits_ref, labels_ref, out_ref, acc_ref):
    """Accumulate sum over pixels of -log_softmax(logits)[label].

    logits_ref: (1, C, rt, 128)   rt multiple of 8 (sublane/lane dense)
    labels_ref: (1, 1, rt, 128)   int32; label < 0 -> masked out (padding)
    acc_ref:    (8, 128)          f32 single-vreg partial-sum accumulator
    out_ref:    (1, 8, 128)       per-batch-index partial sums, written once
    """
    p = pl.program_id(1)

    @pl.when(p == 0)
    def _():
        acc_ref[...] = jnp.zeros_like(acc_ref)

    logits = _to_f32(logits_ref[...])                        # (1, C, rt, 128)
    labels = labels_ref[...]                                 # (1, 1, rt, 128)

    # numerically stable logsumexp over the class axis (C separate vreg slabs,
    # so this is plain VPU work + EUP exp/log; no cross-lane/sublane traffic)
    m = jnp.max(logits, axis=1, keepdims=True)               # (1, 1, rt, 128)
    lse = m + jnp.log(jnp.sum(jnp.exp(logits - m), axis=1, keepdims=True))

    # pick logits[label] via compare-against-iota (C is small; no MXU needed)
    cls = jax.lax.broadcasted_iota(jnp.int32, logits.shape, 1)
    picked = jnp.sum(jnp.where(cls == labels, logits, 0.0),
                     axis=1, keepdims=True)                  # (1, 1, rt, 128)

    loss = jnp.where(labels >= 0, lse - picked, 0.0)         # mask padded px
    rt = loss.shape[2]
    # partial reduce into one vreg: (rt//8, 8, 128) -> sum over leading axis
    acc_ref[...] += jnp.sum(loss.reshape(rt // 8, 8, 128), axis=0)

    @pl.when(p == pl.num_programs(1) - 1)
    def _():
        out_ref[...] = acc_ref[...][None, :, :]


def _l1_sum_kernel(p_ref, g_ref, out_ref, acc_ref):
    """Accumulate sum of |pred - gt| over dense (block_rows, 128) tiles."""
    i = pl.program_id(1)

    @pl.when(i == 0)
    def _():
        acc_ref[...] = jnp.zeros_like(acc_ref)

    diff = jnp.abs(_to_f32(p_ref[...]) - _to_f32(g_ref[...]))
    br = diff.shape[0]
    acc_ref[...] += jnp.sum(diff.reshape(br // 8, 8, 128), axis=0)

    @pl.when(i == pl.num_programs(1) - 1)
    def _():
        out_ref[...] = acc_ref[...][None, :, :]


# ---------------------------------------------------------------------------
# Loss wrappers (JAX glue + pallas_call)
# ---------------------------------------------------------------------------
def _vmem_limit(needed_bytes):
    # keep at least the usual 32 MiB scoped default, raise if the tiles need
    # more, cap below v7x's 64 MiB physical VMEM.
    return int(min(48 << 20, max(32 << 20, 2 * needed_bytes)))


def cross_entropy_loss(logits_nchw, labels_nhw, *, target_block_bytes=4 << 20):
    """Mean pixel-wise cross-entropy, equivalent to F.cross_entropy(NCHW, NHW)."""
    B, C, H, W = logits_nchw.shape
    HW = H * W

    # Free reshapes of NCHW; pad pixel axis to a multiple of 8*128 so every
    # block is sublane/lane dense.  Padded labels are -1 and masked in-kernel.
    logits3d = logits_nchw.reshape(B, C, HW)
    labels2d = labels_nhw.reshape(B, HW).astype(jnp.int32)
    logits3d, _ = _pad_to_multiple(logits3d, _QUANT, axis=2, value=0)
    labels2d, _ = _pad_to_multiple(labels2d, _QUANT, axis=1, value=-1)
    rows = logits3d.shape[2] // 128                          # multiple of 8
    logits4d = logits3d.reshape(B, C, rows, 128)
    labels4d = labels2d.reshape(B, 1, rows, 128)

    itemsize = logits_nchw.dtype.itemsize
    rows_target = max(8, ((target_block_bytes // (C * 128 * itemsize)) // 8) * 8)
    rows_tile = _pick_tile(rows, rows_target, 8)
    grid = (B, rows // rows_tile)

    needed = (2 * C * rows_tile * 128 * itemsize      # double-buffered logits
              + 2 * rows_tile * 128 * 4               # double-buffered labels
              + 8 * 128 * 4 + 2 * 8 * 128 * 4)        # acc + out blocks

    partials = pl.pallas_call(
        _ce_sum_kernel,
        out_shape=jax.ShapeDtypeStruct((B, 8, 128), jnp.float32),
        grid=grid,
        in_specs=[pl.BlockSpec((1, C, rows_tile, 128), lambda b, p: (b, 0, p, 0)),
                  pl.BlockSpec((1, 1, rows_tile, 128), lambda b, p: (b, 0, p, 0))],
        out_specs=pl.BlockSpec((1, 8, 128), lambda b, p: (b, 0, 0)),
        scratch_shapes=[pltpu.VMEM((8, 128), jnp.float32)],
        compiler_params=pltpu.CompilerParams(
            dimension_semantics=("parallel", "arbitrary"),
            vmem_limit_bytes=_vmem_limit(needed)),
    )(logits4d, labels4d)
    return jnp.sum(partials) / (B * HW)


def l1_loss(pred, gt, *, target_block_rows=8192):
    """Mean absolute error, equivalent to F.l1_loss."""
    n = pred.size
    pf = pred.reshape(-1)
    gf = gt.reshape(-1)
    pf, _ = _pad_to_multiple(pf, _QUANT, axis=0, value=0)    # |0-0| = 0
    gf, _ = _pad_to_multiple(gf, _QUANT, axis=0, value=0)
    rows = pf.shape[0] // 128                                # multiple of 8
    p2d = pf.reshape(rows, 128)
    g2d = gf.reshape(rows, 128)

    block_rows = _pick_tile(rows, target_block_rows, 8)
    n_tiles = rows // block_rows
    n_outer = 2 if (n_tiles % 2 == 0 and n_tiles >= 2) else 1   # megacore split
    n_inner = n_tiles // n_outer
    grid = (n_outer, n_inner)

    itemsize = pred.dtype.itemsize
    needed = (2 * 2 * block_rows * 128 * itemsize            # pred + gt, 2-buf
              + 8 * 128 * 4 + 2 * 8 * 128 * 4)

    partials = pl.pallas_call(
        _l1_sum_kernel,
        out_shape=jax.ShapeDtypeStruct((n_outer, 8, 128), jnp.float32),
        grid=grid,
        in_specs=[pl.BlockSpec((block_rows, 128), lambda o, i: (o * n_inner + i, 0)),
                  pl.BlockSpec((block_rows, 128), lambda o, i: (o * n_inner + i, 0))],
        out_specs=pl.BlockSpec((1, 8, 128), lambda o, i: (o, 0, 0)),
        scratch_shapes=[pltpu.VMEM((8, 128), jnp.float32)],
        compiler_params=pltpu.CompilerParams(
            dimension_semantics=("parallel", "arbitrary"),
            vmem_limit_bytes=_vmem_limit(needed)),
    )(p2d, g2d)
    return jnp.sum(partials) / n


# ---------------------------------------------------------------------------
# MultiTaskLoss — forward semantics mirror the PyTorch module exactly
# ---------------------------------------------------------------------------
class WeightedSumLossWeighting:
    """loss_weighting callable: total = sum_t w_t * losses['final'][t]."""

    def __init__(self, weights):
        self.weights = weights  # deterministic, fixed weights

    def __call__(self, losses):
        total = jnp.float32(0.0)
        for task, w in self.weights.items():
            total = total + w * losses['final'][task]
        return total


class MultiTaskLoss:
    def __init__(self, tasks, losses, loss_weighting):
        self.tasks = tasks
        self.losses = losses
        self.loss_weighting = loss_weighting

    def __call__(self, pred, gt):
        preds = {}
        preds['initial'] = pred
        preds['final'] = pred
        losses = {}
        losses['initial'] = {task: self.losses[task](pred[task], gt[task])
                             for task in self.tasks}
        losses['final'] = losses['initial']
        losses['total'] = self.loss_weighting(losses)
        return (losses, preds)


# ---------------------------------------------------------------------------
if __name__ == "__main__":
    key = jax.random.PRNGKey(0)
    k1, k2, k3, k4 = jax.random.split(key, 4)

    B, C, H, W = 2, 4, 16, 16
    pred = {
        "segmentation": jax.random.normal(k1, (B, C, H, W), jnp.float32),
        "depth": jax.random.normal(k2, (B, 1, H, W), jnp.float32),
    }
    gt = {
        "segmentation": jax.random.randint(k3, (B, H, W), 0, C, jnp.int32),
        "depth": jax.random.normal(k4, (B, 1, H, W), jnp.float32),
    }

    tasks = ["segmentation", "depth"]
    losses = {"segmentation": cross_entropy_loss, "depth": l1_loss}
    loss_weights = {"segmentation": 1.0, "depth": 0.5}  # deterministic weights
    mtl = MultiTaskLoss(tasks, losses, WeightedSumLossWeighting(loss_weights))

    out_losses, out_preds = mtl(pred, gt)
    jax.block_until_ready(out_losses["total"])

    # ---- pure-JAX reference check -----------------------------------------
    logits2d = jnp.transpose(pred["segmentation"], (0, 2, 3, 1)).reshape(-1, C)
    labels = gt["segmentation"].reshape(-1)
    lse = jax.nn.logsumexp(logits2d, axis=-1)
    picked = jnp.take_along_axis(logits2d, labels[:, None], axis=-1)[:, 0]
    ref_ce = jnp.mean(lse - picked)
    ref_l1 = jnp.mean(jnp.abs(pred["depth"] - gt["depth"]))
    ref_total = 1.0 * ref_ce + 0.5 * ref_l1

    assert jnp.allclose(out_losses["initial"]["segmentation"], ref_ce, atol=1e-5)
    assert jnp.allclose(out_losses["initial"]["depth"], ref_l1, atol=1e-5)
    assert jnp.allclose(out_losses["final"]["segmentation"], ref_ce, atol=1e-5)
    assert jnp.allclose(out_losses["total"], ref_total, atol=1e-5)
    assert out_preds["initial"] is pred and out_preds["final"] is pred

    print("KERNEL_OK")
</pallas_src>

<mosaic_0001>
module attributes {stable_mosaic.version = 11 : i64} {
  func.func @_ce_sum_kernel(%arg0: i32, %arg1: i32, %arg2: memref<1x4x8x128xf32, #tpu.memory_space<vmem>>, %arg3: memref<1x1x8x128xi32, #tpu.memory_space<vmem>>, %arg4: memref<1x8x128xf32, #tpu.memory_space<vmem>>, %arg5: memref<8x128xf32, #tpu.memory_space<vmem>>) attributes {dimension_semantics = [#tpu.dimension_semantics<parallel>, #tpu.dimension_semantics<arbitrary>], iteration_bounds = array<i64: 2, 1>, scalar_prefetch = 0 : i64, scratch_operands = 1 : i64, tpu.core_type = #tpu.core_type<tc>, window_params = [{transform_indices = @transform_0, window_bounds = array<i64: 1, 4, 8, 128>}, {transform_indices = @transform_1, window_bounds = array<i64: 1, 1, 8, 128>}, {transform_indices = @transform_2, window_bounds = array<i64: 1, 8, 128>}]} {
    %c0_i32 = arith.constant 0 : i32
    %0 = arith.cmpi eq, %arg1, %c0_i32 : i32
    %1 = arith.extui %0 : i1 to i32
    %c0_i32_0 = arith.constant 0 : i32
    %2 = arith.cmpi ne, %1, %c0_i32_0 : i32
    scf.if %2 {
      %cst_20 = arith.constant 0.000000e+00 : f32
      %34 = vector.broadcast %cst_20 : f32 to vector<8x128xf32>
      %c0_21 = arith.constant 0 : index
      %c0_22 = arith.constant 0 : index
      %35 = vector.load %arg5[%c0_21, %c0_22] : memref<8x128xf32, #tpu.memory_space<vmem>>, vector<8x128xf32>
      tpu.vector_store %arg5[%c0_21, %c0_22], %34 {strides = array<i32>} : memref<8x128xf32, #tpu.memory_space<vmem>>, vector<8x128xf32>,
    } else {
    }
    %c0 = arith.constant 0 : index
    %c0_1 = arith.constant 0 : index
    %c0_2 = arith.constant 0 : index
    %c0_3 = arith.constant 0 : index
    %3 = vector.load %arg2[%c0, %c0_1, %c0_2, %c0_3] : memref<1x4x8x128xf32, #tpu.memory_space<vmem>>, vector<1x4x8x128xf32>
    %c0_4 = arith.constant 0 : index
    %c0_5 = arith.constant 0 : index
    %c0_6 = arith.constant 0 : index
    %c0_7 = arith.constant 0 : index
    %4 = vector.load %arg3[%c0_4, %c0_5, %c0_6, %c0_7] : memref<1x1x8x128xi32, #tpu.memory_space<vmem>>, vector<1x1x8x128xi32>
    %cst = arith.constant dense<0xFF800000> : vector<1x8x128xf32>
    %5 = vector.multi_reduction <maximumf>, %3, %cst [1] : vector<1x4x8x128xf32> to vector<1x8x128xf32>
    %6 = vector.shape_cast %5 : vector<1x8x128xf32> to vector<1x1x8x128xf32>
    %7 = vector.broadcast %6 : vector<1x1x8x128xf32> to vector<1x4x8x128xf32>
    %8 = arith.subf %3, %7 : vector<1x4x8x128xf32>
    %9 = math.exp %8 : vector<1x4x8x128xf32>
    %cst_8 = arith.constant dense<0.000000e+00> : vector<1x8x128xf32>
    %10 = vector.multi_reduction <add>, %9, %cst_8 [1] : vector<1x4x8x128xf32> to vector<1x8x128xf32>
    %11 = vector.shape_cast %10 : vector<1x8x128xf32> to vector<1x1x8x128xf32>
    %12 = math.log %11 : vector<1x1x8x128xf32>
    %13 = arith.addf %6, %12 : vector<1x1x8x128xf32>
    %14 = tpu.iota {dimensions = array<i32: 1>} : vector<1x4x8x128xi32>
    %15 = vector.broadcast %4 : vector<1x1x8x128xi32> to vector<1x4x8x128xi32>
    %16 = arith.cmpi eq, %14, %15 : vector<1x4x8x128xi32>
    %cst_9 = arith.constant 0.000000e+00 : f32
    %17 = vector.broadcast %cst_9 : f32 to vector<1x4x8x128xf32>
    %18 = arith.select %16, %3, %17 : vector<1x4x8x128xi1>, vector<1x4x8x128xf32>
    %cst_10 = arith.constant dense<0.000000e+00> : vector<1x8x128xf32>
    %19 = vector.multi_reduction <add>, %18, %cst_10 [1] : vector<1x4x8x128xf32> to vector<1x8x128xf32>
    %20 = vector.shape_cast %19 : vector<1x8x128xf32> to vector<1x1x8x128xf32>
    %c0_i32_11 = arith.constant 0 : i32
    %21 = vector.broadcast %c0_i32_11 : i32 to vector<1x1x8x128xi32>
    %22 = arith.cmpi sge, %4, %21 : vector<1x1x8x128xi32>
    %23 = arith.subf %13, %20 : vector<1x1x8x128xf32>
    %cst_12 = arith.constant 0.000000e+00 : f32
    %24 = vector.broadcast %cst_12 : f32 to vector<1x1x8x128xf32>
    %25 = arith.select %22, %23, %24 : vector<1x1x8x128xi1>, vector<1x1x8x128xf32>
    %c0_13 = arith.constant 0 : index
    %c0_14 = arith.constant 0 : index
    %26 = vector.load %arg5[%c0_13, %c0_14] : memref<8x128xf32, #tpu.memory_space<vmem>>, vector<8x128xf32>
    %27 = vector.shape_cast %25 : vector<1x1x8x128xf32> to vector<1x8x128xf32>
    %cst_15 = arith.constant dense<0.000000e+00> : vector<8x128xf32>
    %28 = vector.multi_reduction <add>, %27, %cst_15 [0] : vector<1x8x128xf32> to vector<8x128xf32>
    %29 = arith.addf %26, %28 : vector<8x128xf32>
    %c0_16 = arith.constant 0 : index
    %c0_17 = arith.constant 0 : index
    %30 = vector.load %arg5[%c0_16, %c0_17] : memref<8x128xf32, #tpu.memory_space<vmem>>, vector<8x128xf32>
    tpu.vector_store %arg5[%c0_16, %c0_17], %29 {strides = array<i32>} : memref<8x128xf32, #tpu.memory_space<vmem>>, vector<8x128xf32>,
    %c0_i32_18 = arith.constant 0 : i32
    %31 = arith.cmpi eq, %arg1, %c0_i32_18 : i32
    %32 = arith.extui %31 : i1 to i32
    %c0_i32_19 = arith.constant 0 : i32
    %33 = arith.cmpi ne, %32, %c0_i32_19 : i32
    scf.if %33 {
      %c0_20 = arith.constant 0 : index
      %c0_21 = arith.constant 0 : index
      %34 = vector.load %arg5[%c0_20, %c0_21] : memref<8x128xf32, #tpu.memory_space<vmem>>, vector<8x128xf32>
      %35 = vector.shape_cast %34 : vector<8x128xf32> to vector<1x8x128xf32>
      %c0_22 = arith.constant 0 : index
      %c0_23 = arith.constant 0 : index
      %c0_24 = arith.constant 0 : index
      %36 = vector.load %arg4[%c0_22, %c0_23, %c0_24] : memref<1x8x128xf32, #tpu.memory_space<vmem>>, vector<1x8x128xf32>
      tpu.vector_store %arg4[%c0_22, %c0_23, %c0_24], %35 {strides = array<i32>} : memref<1x8x128xf32, #tpu.memory_space<vmem>>, vector<1x8x128xf32>,
    } else {
    }
    return
  }
  func.func @transform_0(%arg0: i32, %arg1: i32) -> (i32, i32, i32, i32) {
    %c0_i32 = arith.constant 0 : i32
    %c0_i32_0 = arith.constant 0 : i32
    %c0_i32_1 = arith.constant 0 : i32
    return %arg0, %c0_i32, %arg1, %c0_i32_0 : i32, i32, i32, i32
  }
  func.func @transform_1(%arg0: i32, %arg1: i32) -> (i32, i32, i32, i32) {
    %c0_i32 = arith.constant 0 : i32
    %c0_i32_0 = arith.constant 0 : i32
    %c0_i32_1 = arith.constant 0 : i32
    return %arg0, %c0_i32, %arg1, %c0_i32_0 : i32, i32, i32, i32
  }
  func.func @transform_2(%arg0: i32, %arg1: i32) -> (i32, i32, i32) {
    %c0_i32 = arith.constant 0 : i32
    %c0_i32_0 = arith.constant 0 : i32
    %c0_i32_1 = arith.constant 0 : i32
    return %arg0, %c0_i32, %c0_i32_0 : i32, i32, i32
  }
}

</mosaic_0001>

<llo_original>
// kernel: tpu_custom_call.1
$region0: #{tpu_custom_call.1}
  #allocation0 [shape = 'u32[]', space=smem, size = 0x4, offset = 0x4, fixed_abs, tag = 'smem constant byte address 0x4 - core index']
  #allocation1 [shape = 'u32[144,128]{1,0:T(1,128)}', space=vmem, size = 0x12000, scoped, tag = 'internal scratch']
  #allocation2 [shape = 'f32[8,128]{1,0:T(8,128)}', space=vmem, size = 0x1000, scoped, tag = 'scratch operand']
  %s0 = inlined_call_operand.hbm [shape: f32[2,4,8,128], index: 0, kind: input, shape index: {}]
  %s1 = inlined_call_operand.hbm [shape: s32[2,1,8,128], index: 1, kind: input, shape index: {}]
  %s2 = inlined_call_operand.hbm [shape: f32[2,8,128], index: 2, kind: output, shape index: {}]
  %s3 = sld [smem:[#allocation0]]
  $region57: #{tpu_custom_call.1} parent=0
    _
  %s5 = ssub.s32 1, %s3
  %s6 = scalar_select 0, %s5, %s3
  $region1: #{tpu_custom_call.1} parent=0
    #allocation3 [shape = 'u8[32768]{0}', space=vmem, size = 0x8000, scoped, tag = 'input window, operand 0']
    #allocation4 [shape = 's32[2]{0}', space=sflag, size = 0x8, scoped, tag = 'scoped memory for tpu_custom_call.1']
    #allocation5 [shape = 's32[2]{0}', space=sflag, size = 0x8, scoped, tag = 'scoped memory for tpu_custom_call.1']
    #allocation6 [shape = 'u8[8192]{0}', space=vmem, size = 0x2000, scoped, tag = 'input window, operand 1']
    #allocation7 [shape = 's32[2]{0}', space=sflag, size = 0x8, scoped, tag = 'scoped memory for tpu_custom_call.1']
    #allocation8 [shape = 'u8[8192]{0}', space=vmem, size = 0x2000, scoped, tag = 'output window, operand 0']
    %7 = vsyncpa [#allocation4], 0
    %s8 = scalar_lea.sflag [#allocation4], 1
    %9 = vsyncpa %s8, 0
    %10 = vsyncpa [#allocation7], 0
    %s11 = scalar_lea.sflag [#allocation7], 1
    %12 = vsyncpa %s11, 0
    %13 = vsyncpa [#allocation5], 0
    %s14 = scalar_lea.sflag [#allocation5], 1
    %15 = vsyncpa %s14, 0
    loop: start=0, step=1, limit=4
    $region2: #{tpu_custom_call.1} parent=1 // loop_pre_header
      _
    $region3: #{tpu_custom_call.1} parent=1 // loop_header
      %s17 = sphi 0, %s21
      %p18 = scmp.ge.s32.totalorder %s17, 4
      %s24 = sphi 0, %s36
      %s25 = sphi 0, %s32
      %s26 = sphi 0, %s24
      %s27 = sphi 0, %s25
      %s28 = sphi 0, %s26
      %s29 = sphi 0, %s27
      %s41 = sphi 0, %s43
      %s44 = sphi 0, %s41
      %s45 = sphi 0, %s44
      %s61 = sphi 0, %s45
      %s69 = sphi 0, %s71
      %s72 = sphi 0, %s69
      %s73 = sphi 0, %s72
      %s89 = sphi 0, %s73
      %s95 = sphi 0, %s97
      %s98 = sphi 0, %s95
      %s99 = sphi 0, %s98
      %s115 = sphi 0, %s99
    $region4: #{tpu_custom_call.1} parent=1 // loop_header_branch
      %20 = sbr.rel (%p18) target = $region8
    $region5: #{tpu_custom_call.1} parent=1 // loop_body
      %s22 = ssub.s32 %s17, 1
      %s23 = ssub.s32 %s17, 2
      %s30 = sadd.s32 1, %s25
      %p31 = scmp.ge.s32.totalorder %s30, 1
      %s32 = scalar_select %p31, 0, %s30
      %s33 = sadd.s32 1, %s24
      %s34 = scalar_select %p31, %s33, %s24
      %p35 = scmp.ge.s32.totalorder %s34, 2
      %s36 = scalar_select %p35, 0, %s34
      %s37 = ssub.s32 %s24, %s36
      %s38 = ssub.s32 %s25, %s32
      %s39 = sor.u32 %s37, %s38
      %p40 = scmp.eq.s32.totalorder %s39, 0
      %s42 = sadd.s32 %s41, 1
      %s43 = scalar_select %p40, %s41, %s42
      %p46 = pneg %p40
      %p47 = scmp.eq.s32.totalorder %s17, 1
      %p48 = por %p46, %p47
      %p49 = scmp.ne.s32.totalorder %s41, %s44
      %p50 = scmp.eq.s32.totalorder %s17, 0
      %p51 = por %p49, %p50
      %p52 = scmp.ne.s32.totalorder %s41, %s44
      %p53 = scmp.eq.s32.totalorder %s22, 1
      %p54 = por %p52, %p53
      %p55 = scmp.ne.s32.totalorder %s44, %s45
      %p56 = scmp.eq.s32.totalorder %s22, 0
      %p57 = por %p55, %p56
      %p58 = scmp.ne.s32.totalorder %s44, %s45
      %p59 = scmp.eq.s32.totalorder %s23, 1
      %p60 = por %p58, %p59
      %p62 = scmp.ne.s32.totalorder %s45, %s61
      %p63 = scmp.eq.s32.totalorder %s23, 0
      %p64 = por %p62, %p63
      %s65 = ssub.s32 %s24, %s36
      %s66 = ssub.s32 %s25, %s32
      %s67 = sor.u32 %s65, %s66
      %p68 = scmp.eq.s32.totalorder %s67, 0
      %s70 = sadd.s32 %s69, 1
      %s71 = scalar_select %p68, %s69, %s70
      %p74 = pneg %p68
      %p75 = scmp.eq.s32.totalorder %s17, 1
      %p76 = por %p74, %p75
      %p77 = scmp.ne.s32.totalorder %s69, %s72
      %p78 = scmp.eq.s32.totalorder %s17, 0
      %p79 = por %p77, %p78
      %p80 = scmp.ne.s32.totalorder %s69, %s72
      %p81 = scmp.eq.s32.totalorder %s22, 1
      %p82 = por %p80, %p81
      %p83 = scmp.ne.s32.totalorder %s72, %s73
      %p84 = scmp.eq.s32.totalorder %s22, 0
      %p85 = por %p83, %p84
      %p86 = scmp.ne.s32.totalorder %s72, %s73
      %p87 = scmp.eq.s32.totalorder %s23, 1
      %p88 = por %p86, %p87
      %p90 = scmp.ne.s32.totalorder %s73, %s89
      %p91 = scmp.eq.s32.totalorder %s23, 0
      %p92 = por %p90, %p91
      %s93 = ssub.s32 %s24, %s36
      %p94 = scmp.eq.s32.totalorder %s93, 0
      %s96 = sadd.s32 %s95, 1
      %s97 = scalar_select %p94, %s95, %s96
      %p100 = pneg %p94
      %p101 = scmp.eq.s32.totalorder %s17, 1
      %p102 = por %p100, %p101
      %p103 = scmp.ne.s32.totalorder %s95, %s98
      %p104 = scmp.eq.s32.totalorder %s17, 0
      %p105 = por %p103, %p104
      %p106 = scmp.ne.s32.totalorder %s95, %s98
      %p107 = scmp.eq.s32.totalorder %s22, 1
      %p108 = por %p106, %p107
      %p109 = scmp.ne.s32.totalorder %s98, %s99
      %p110 = scmp.eq.s32.totalorder %s22, 0
      %p111 = por %p109, %p110
      %p112 = scmp.ne.s32.totalorder %s98, %s99
      %p113 = scmp.eq.s32.totalorder %s23, 1
      %p114 = por %p112, %p113
      %p116 = scmp.ne.s32.totalorder %s99, %s115
      %p117 = scmp.eq.s32.totalorder %s23, 0
      %p118 = por %p116, %p117
      %p119 = scmp.le.s32.totalorder 1, %s17
      %p120 = scmp.lt.s32.totalorder %s17, 3
      %p121 = pnand %p119, %p120
      %p122 = pneg %p121
      // Predicated region
      $region9: #{tpu_custom_call.1} parent=5 // pred_check
        _
      $region10: #{tpu_custom_call.1} parent=5 // pred_check_branch
        %124 = sbr.rel (%p121) target = $region12
      $region11: #{tpu_custom_call.1} parent=5 // pred_region
        %s125 = ssub.s32 %s17, 1
      $region12: #{tpu_custom_call.1} parent=5 // pred_fallthru
        _
      %p126 = scmp.lt.s32.totalorder %s17, 2
      // Predicated region
      $region13: #{tpu_custom_call.1} parent=5 // pred_check
        %p127 = pneg %p126
      $region14: #{tpu_custom_call.1} parent=5 // pred_check_branch
        %129 = sbr.rel (%p127) target = $region16
      $region15: #{tpu_custom_call.1} parent=5 // pred_region
        // Predicated region
        $region17: #{tpu_custom_call.1} parent=15 // pred_check
          %p130 = pneg %p51
        $region18: #{tpu_custom_call.1} parent=15 // pred_check_branch
          %132 = sbr.rel (%p130) target = $region20
        $region19: #{tpu_custom_call.1} parent=15 // pred_region
          %s133 = sand.u32 %s41, 1
          %s134 = scalar_lea.sflag [#allocation4], %s133
          %s135 = sand.u32 %s41, 1
          %s136 = smul.addr %s135, 32
          %s137 = scalar_lea.vmem [#allocation3], %s136
          %s139 = ssub.s32 512, 512
          %140 = vsyncadd %s134, %s139
          %s141 = smul.addr %s24, 4
          %s142 = sadd.s32 %s25, %s141
          %s143 = smul.addr %s142, 128
          %s144 = scalar_lea.hbm %s0, %s143
          %s145 = sshll.u32 %s137, 4
          %s146 = int_to_ptr.vmem [resolvable:$true] %s145
          %151 = dma.hbm_to_vmem [thread:$0]  %s144, 512, %s146, %s134, 128, 128, 8
        $region20: #{tpu_custom_call.1} parent=15 // pred_fallthru
          _
        // Predicated region
        $region21: #{tpu_custom_call.1} parent=15 // pred_check
          %p152 = pneg %p79
        $region22: #{tpu_custom_call.1} parent=15 // pred_check_branch
          %154 = sbr.rel (%p152) target = $region24
        $region23: #{tpu_custom_call.1} parent=15 // pred_region
          %s155 = sand.u32 %s69, 1
          %s156 = scalar_lea.sflag [#allocation7], %s155
          %s157 = sand.u32 %s69, 1
          %s158 = smul.addr %s157, 8
          %s159 = scalar_lea.vmem [#allocation6], %s158
          %s161 = ssub.s32 128, 128
          %162 = vsyncadd %s156, %s161
          %s163 = sadd.s32 %s25, %s24
          %s164 = smul.addr %s163, 128
          %s165 = scalar_lea.hbm %s1, %s164
          %s167 = sshll.u32 %s159, 4
          %s168 = int_to_ptr.vmem [resolvable:$true] %s167
          %170 = dma.hbm_to_vmem [thread:$0]  %s165, 128, %s168, %s156
        $region24: #{tpu_custom_call.1} parent=15 // pred_fallthru
          _
      $region16: #{tpu_custom_call.1} parent=5 // pred_fallthru
        _
      %p171 = scmp.le.s32.totalorder 1, %s17
      %p172 = scmp.lt.s32.totalorder %s17, 3
      %p173 = pnand %p171, %p172
      %p174 = pneg %p173
      // Predicated region
      $region25: #{tpu_custom_call.1} parent=5 // pred_check
        _
      $region26: #{tpu_custom_call.1} parent=5 // pred_check_branch
        %176 = sbr.rel (%p173) target = $region28
      $region27: #{tpu_custom_call.1} parent=5 // pred_region
        %s177 = ssub.s32 %s17, 1
        %s178 = sand.u32 %s44, 1
        %s179 = scalar_lea.sflag [#allocation4], %s178
        %s180 = sand.u32 %s44, 1
        %s181 = smul.addr %s180, 32
        %s182 = scalar_lea.vmem [#allocation3], %s181
        // Predicated region
        $region29: #{tpu_custom_call.1} parent=27 // pred_check
          %p183 = pneg %p57
        $region30: #{tpu_custom_call.1} parent=27 // pred_check_branch
          %185 = sbr.rel (%p183) target = $region32
        $region31: #{tpu_custom_call.1} parent=27 // pred_region
          %186 = dma.done %s179, 512
        $region32: #{tpu_custom_call.1} parent=27 // pred_fallthru
          _
        %s187 = sand.u32 %s72, 1
        %s188 = scalar_lea.sflag [#allocation7], %s187
        %s189 = sand.u32 %s72, 1
        %s190 = smul.addr %s189, 8
        %s191 = scalar_lea.vmem [#allocation6], %s190
        // Predicated region
        $region33: #{tpu_custom_call.1} parent=27 // pred_check
          %p192 = pneg %p85
        $region34: #{tpu_custom_call.1} parent=27 // pred_check_branch
          %194 = sbr.rel (%p192) target = $region36
        $region35: #{tpu_custom_call.1} parent=27 // pred_region
          %195 = dma.done %s188, 128
        $region36: #{tpu_custom_call.1} parent=27 // pred_fallthru
          _
        %s196 = sand.u32 %s44, 1
        %s197 = scalar_lea.sflag [#allocation4], %s196
        %s198 = sand.u32 %s44, 1
        %s199 = smul.addr %s198, 32
        %s200 = scalar_lea.vmem [#allocation3], %s199
        %p201 = pneg %p57
        %p202 = pneg %p54
        %s203 = sand.u32 %s72, 1
        %s204 = scalar_lea.sflag [#allocation7], %s203
        %s205 = sand.u32 %s72, 1
        %s206 = smul.addr %s205, 8
        %s207 = scalar_lea.vmem [#allocation6], %s206
        %p208 = pneg %p85
        %p209 = pneg %p82
        %p210 = pneg %p111
        %p211 = pneg %p108
        %s212 = sand.u32 %s98, 1
        %s213 = scalar_lea.sflag [#allocation5], %s212
        %s214 = sand.u32 %s98, 1
        %s215 = smul.addr %s214, 8
        %s216 = scalar_lea.vmem [#allocation8], %s215
        %p217 = scmp.eq.s32.totalorder %s27, 0
        // Predicated region
        $region37: #{tpu_custom_call.1} parent=27 // pred_check
          %p218 = pneg %p217
        $region38: #{tpu_custom_call.1} parent=27 // pred_check_branch
          %220 = sbr.rel (%p218) target = $region40
        $region39: #{tpu_custom_call.1} parent=27 // pred_region
          %221 = vst [vmem:[#allocation2] sm:$0xff] 0.0
        $region40: #{tpu_custom_call.1} parent=27 // pred_fallthru
          _
        %v222 = vld [vmem:[%s182] sm:$0xff]
        %v223 = vld [vmem:[%s182 + $0x8] sm:$0xff]
        %v224 = vld [vmem:[%s182 + $0x10] sm:$0xff]
        %v225 = vld [vmem:[%s182 + $0x18] sm:$0xff]
        %v226 = vld [vmem:[%s191] sm:$0xff]
        %v227 = vmax.f32 %v222, %v223
        %v228 = vmax.f32 %v224, %v225
        %v229 = vmax.f32 %v227, %v228
        %v230 = vsub.f32 %v222, %v229
        %v231 = vsub.f32 %v223, %v229
        %v232 = vsub.f32 %v224, %v229
        %v233 = vsub.f32 %v225, %v229
        %v234 = vmul.f32 %v230, 1.442695
        %v235 = vpow.pop %v234
        %v236 = vmul.f32 %v231, 1.442695
        %v237 = vpow.pop %v236
        %v238 = vmul.f32 %v232, 1.442695
        %v239 = vpow.pop %v238
        %v240 = vmul.f32 %v233, 1.442695
        %v241 = vpow.pop %v240
        %v242 = vadd.f32 %v235, %v237
        %v243 = vadd.f32 %v242, %v239
        %v244 = vadd.f32 %v243, %v241
        %v245 = vlog2.pop %v244
        %v246 = vmul.f32 %v245, 0.6931472
        %v247 = vadd.f32 %v229, %v246
        %vm248 = vcmp.eq.s32.totalorder %v226, 0
        %vm249 = vcmp.eq.s32.totalorder %v226, 1
        %vm250 = vcmp.eq.s32.totalorder %v226, 2
        %vm251 = vcmp.eq.s32.totalorder %v226, 3
        %v252 = vsel %vm248, %v222, 0.0
        %v253 = vsel %vm249, %v223, 0.0
        %v254 = vsel %vm250, %v224, 0.0
        %v255 = vsel %vm251, %v225, 0.0
        %v256 = vadd.f32 %v252, %v253
        %v257 = vadd.f32 %v256, %v254
        %v258 = vadd.f32 %v257, %v255
        %vm259 = vcmp.ge.s32.totalorder %v226, 0
        %v260 = vsub.f32 %v247, %v258
        %v261 = vsel %vm259, %v260, 0.0
        %v262 = vld [vmem:[#allocation2] sm:$0xff]
        %v263 = vadd.f32 %v261, 0.0
        %v264 = vadd.f32 %v262, %v263
        %265 = vst [vmem:[#allocation2] sm:$0xff] %v264
        // Predicated region
        $region41: #{tpu_custom_call.1} parent=27 // pred_check
          %p266 = pneg %p217
        $region42: #{tpu_custom_call.1} parent=27 // pred_check_branch
          %268 = sbr.rel (%p266) target = $region44
        $region43: #{tpu_custom_call.1} parent=27 // pred_region
          %v269 = vld [vmem:[#allocation2] sm:$0xff]
          %270 = vst [vmem:[%s216] sm:$0xff] %v269
        $region44: #{tpu_custom_call.1} parent=27 // pred_fallthru
          _
        %s271 = sand.u32 %s98, 1
        %s272 = scalar_lea.sflag [#allocation5], %s271
        %s273 = sand.u32 %s98, 1
        %s274 = smul.addr %s273, 8
        %s275 = scalar_lea.vmem [#allocation8], %s274
        // Predicated region
        $region45: #{tpu_custom_call.1} parent=27 // pred_check
          %p276 = pneg %p108
        $region46: #{tpu_custom_call.1} parent=27 // pred_check_branch
          %278 = sbr.rel (%p276) target = $region48
        $region47: #{tpu_custom_call.1} parent=27 // pred_region
          %s280 = ssub.s32 128, 128
          %281 = vsyncadd %s272, %s280
          %s282 = smul.addr %s26, 128
          %s283 = scalar_lea.hbm %s2, %s282
          %s285 = sshll.u32 %s275, 4
          %s286 = int_to_ptr.vmem [resolvable:$true] %s285
          %288 = dma.vmem_to_hbm [thread:$0]  %s286, 128, %s283, %s272
        $region48: #{tpu_custom_call.1} parent=27 // pred_fallthru
          _
      $region28: #{tpu_custom_call.1} parent=5 // pred_fallthru
        _
      %p289 = scmp.le.s32.totalorder 2, %s17
      // Predicated region
      $region49: #{tpu_custom_call.1} parent=5 // pred_check
        %p290 = pneg %p289
      $region50: #{tpu_custom_call.1} parent=5 // pred_check_branch
        %292 = sbr.rel (%p290) target = $region52
      $region51: #{tpu_custom_call.1} parent=5 // pred_region
        %s293 = ssub.s32 %s17, 2
        // Predicated region
        $region53: #{tpu_custom_call.1} parent=51 // pred_check
          %p294 = pneg %p114
        $region54: #{tpu_custom_call.1} parent=51 // pred_check_branch
          %296 = sbr.rel (%p294) target = $region56
        $region55: #{tpu_custom_call.1} parent=51 // pred_region
          %s297 = sand.u32 %s99, 1
          %s298 = scalar_lea.sflag [#allocation5], %s297
          %s299 = sand.u32 %s99, 1
          %s300 = smul.addr %s299, 8
          %s301 = scalar_lea.vmem [#allocation8], %s300
          %302 = dma.done %s298, 128
        $region56: #{tpu_custom_call.1} parent=51 // pred_fallthru
          _
      $region52: #{tpu_custom_call.1} parent=5 // pred_fallthru
        _
    $region6: #{tpu_custom_call.1} parent=1 // loop_footer
      %s21 = sadd.s32 1, %s17
    $region7: #{tpu_custom_call.1} parent=1 // loop_footer_branch
      %16 = sbr.rel target = $region3
    $region8: #{tpu_custom_call.1} parent=1 // loop_exit
      _
    %303 = vsyncpa [#allocation4], 1
    %s304 = scalar_lea.sflag [#allocation4], 1
    %305 = vsyncpa %s304, 1
    %306 = vsyncpa [#allocation7], 1
    %s307 = scalar_lea.sflag [#allocation7], 1
    %308 = vsyncpa %s307, 1
    %309 = vsyncpa [#allocation5], 1
    %s310 = scalar_lea.sflag [#allocation5], 1
    %311 = vsyncpa %s310, 1

</llo_original>
